<compile_context>
chip_gen: v7x
topology: tpu7x:2x2x1
jax: 0.10.0
libtpu: 0.0.40
codegen_flags: <defaults>
</compile_context>

<pallas_src>
import jax
import jax.numpy as jnp
from jax.experimental import pallas as pl
from jax.experimental.pallas import tpu as pltpu


def _round_up(n, m):
    return ((n + m - 1) // m) * m


def mlp_kernel(xT_ref, w1_ref, b1_ref, w2_ref, b2_ref, w3_ref, b3_ref,
               w4_ref, b4_ref, oT_ref):
    # Lane-dense layout: batch on lanes (last dim), features on sublanes.
    xT = xT_ref[...]                                                        # (9, TB)

    h1 = jnp.dot(w1_ref[...], xT, preferred_element_type=jnp.float32) + b1_ref[...]
    h1 = jnp.maximum(h1, 0.0)                                               # (30, TB)

    h2 = jnp.dot(w2_ref[...], h1, preferred_element_type=jnp.float32) + b2_ref[...]
    h2 = jnp.maximum(h2, 0.0)                                               # (30, TB)
    # TODO(synk): dropout1 (p=0.1) / dropout2 (p=0.2) are identity in eval mode;
    # training-mode masking via pltpu.prng_random_bits is not implemented here.

    h3 = jnp.dot(w3_ref[...], h2, preferred_element_type=jnp.float32) + b3_ref[...]
    h3 = jnp.maximum(h3, 0.0)                                               # (30, TB)

    logits = jnp.dot(w4_ref[...], h3, preferred_element_type=jnp.float32) + b4_ref[...]  # (2, TB)

    # 2-class softmax in closed form: p0 = sigmoid(l0 - l1), p1 = 1 - p0.
    # Pure VPU/EUP, no XLU reduce over a 2-wide axis.
    p0 = jax.nn.sigmoid(logits[0:1, :] - logits[1:2, :])                    # (1, TB)
    probs = jnp.concatenate([p0, 1.0 - p0], axis=0)                         # (2, TB)
    oT_ref[...] = probs.astype(oT_ref.dtype)


def mymodule8_forward(x, params, *, tb=1024):
    """x: (B, 9) float32. params: weights as (out, in), biases as (out, 1)."""
    w1, b1, w2, b2, w3, b3, w4, b4 = params
    B, F = x.shape
    assert F == 9

    # Batch tile: multiple of 128 lanes; large enough to amortize per-step
    # overhead, small enough (~a few hundred KiB double-buffered) to be far
    # below even v7x's 32 MiB scoped VMEM budget.
    TB = min(tb, _round_up(B, 128))
    Bp = _round_up(B, TB)
    grid = (Bp // TB,)

    # Transpose + zero-pad once on the host so the batch dim maps to lanes.
    xT = jnp.zeros((F, Bp), jnp.float32).at[:, :B].set(x.T.astype(jnp.float32))

    def resident(a):  # weights/biases: constant block index -> stay in VMEM
        return pl.BlockSpec(a.shape, lambda i: (0, 0))

    outT = pl.pallas_call(
        mlp_kernel,
        out_shape=jax.ShapeDtypeStruct((2, Bp), jnp.float32),
        grid=grid,
        in_specs=[
            pl.BlockSpec((F, TB), lambda i: (0, i)),   # xT, batch-blocked
            resident(w1), resident(b1),
            resident(w2), resident(b2),
            resident(w3), resident(b3),
            resident(w4), resident(b4),
        ],
        out_specs=pl.BlockSpec((2, TB), lambda i: (0, i)),
        compiler_params=pltpu.CompilerParams(
            dimension_semantics=("parallel",)),
    )(xT, w1, b1, w2, b2, w3, b3, w4, b4)

    # Back to the PyTorch-facing (B, 2) layout; drop batch padding.
    return outT[:, :B].T


def init_params(key, bias_const=0.05):
    # Deterministic xavier-uniform-like init, PyTorch weight layout (out, in).
    def linear(k, fan_in, fan_out):
        limit = (6.0 / (fan_in + fan_out)) ** 0.5
        w = jax.random.uniform(k, (fan_out, fan_in), jnp.float32, -limit, limit)
        b = jnp.full((fan_out, 1), bias_const, jnp.float32)
        return w, b

    k1, k2, k3, k4 = jax.random.split(key, 4)
    w1, b1 = linear(k1, 9, 30)
    w2, b2 = linear(k2, 30, 30)
    w3, b3 = linear(k3, 30, 30)
    w4, b4 = linear(k4, 30, 2)
    return (w1, b1, w2, b2, w3, b3, w4, b4)


def ref_forward(x, params):
    w1, b1, w2, b2, w3, b3, w4, b4 = params
    h = jax.nn.relu(x @ w1.T + b1[:, 0])
    h = jax.nn.relu(h @ w2.T + b2[:, 0])
    h = jax.nn.relu(h @ w3.T + b3[:, 0])
    return jax.nn.softmax(h @ w4.T + b4[:, 0], axis=-1)


if __name__ == "__main__":
    key = jax.random.PRNGKey(0)
    k_params, k_x = jax.random.split(key)
    params = init_params(k_params)

    batch = 8
    x = jax.random.normal(k_x, (batch, 9), jnp.float32)

    out = mymodule8_forward(x, params)
    out = jax.block_until_ready(out)

    # correctness: shape, rows sum to 1, matches pure-JAX reference
    assert out.shape == (batch, 2)
    assert jnp.allclose(jnp.sum(out, axis=-1), 1.0, atol=1e-5)
    expected = ref_forward(x, params)
    assert jnp.allclose(out, expected, atol=1e-5, rtol=1e-5)
    print("KERNEL_OK")
</pallas_src>

<mosaic_0001>
module attributes {stable_mosaic.version = 11 : i64} {
  func.func @mlp_kernel(%arg0: i32, %arg1: memref<9x128xf32, #tpu.memory_space<vmem>>, %arg2: memref<30x9xf32, #tpu.memory_space<vmem>>, %arg3: memref<30x1xf32, #tpu.memory_space<vmem>>, %arg4: memref<30x30xf32, #tpu.memory_space<vmem>>, %arg5: memref<30x1xf32, #tpu.memory_space<vmem>>, %arg6: memref<30x30xf32, #tpu.memory_space<vmem>>, %arg7: memref<30x1xf32, #tpu.memory_space<vmem>>, %arg8: memref<2x30xf32, #tpu.memory_space<vmem>>, %arg9: memref<2x1xf32, #tpu.memory_space<vmem>>, %arg10: memref<2x128xf32, #tpu.memory_space<vmem>>) attributes {dimension_semantics = [#tpu.dimension_semantics<parallel>], iteration_bounds = array<i64: 1>, scalar_prefetch = 0 : i64, scratch_operands = 0 : i64, tpu.core_type = #tpu.core_type<tc>, window_params = [{transform_indices = @transform_0, window_bounds = array<i64: 9, 128>}, {pipeline_mode = #tpu.pipeline_mode<synchronous>, transform_indices = @transform_1, window_bounds = array<i64: 30, 9>}, {pipeline_mode = #tpu.pipeline_mode<synchronous>, transform_indices = @transform_2, window_bounds = array<i64: 30, 1>}, {pipeline_mode = #tpu.pipeline_mode<synchronous>, transform_indices = @transform_3, window_bounds = array<i64: 30, 30>}, {pipeline_mode = #tpu.pipeline_mode<synchronous>, transform_indices = @transform_4, window_bounds = array<i64: 30, 1>}, {pipeline_mode = #tpu.pipeline_mode<synchronous>, transform_indices = @transform_5, window_bounds = array<i64: 30, 30>}, {pipeline_mode = #tpu.pipeline_mode<synchronous>, transform_indices = @transform_6, window_bounds = array<i64: 30, 1>}, {pipeline_mode = #tpu.pipeline_mode<synchronous>, transform_indices = @transform_7, window_bounds = array<i64: 2, 30>}, {pipeline_mode = #tpu.pipeline_mode<synchronous>, transform_indices = @transform_8, window_bounds = array<i64: 2, 1>}, {transform_indices = @transform_9, window_bounds = array<i64: 2, 128>}]} {
    %c0 = arith.constant 0 : index
    %c0_0 = arith.constant 0 : index
    %0 = vector.load %arg1[%c0, %c0_0] : memref<9x128xf32, #tpu.memory_space<vmem>>, vector<9x128xf32>
    %c0_1 = arith.constant 0 : index
    %c0_2 = arith.constant 0 : index
    %1 = vector.load %arg2[%c0_1, %c0_2] : memref<30x9xf32, #tpu.memory_space<vmem>>, vector<30x9xf32>
    %cst = arith.constant dense<0.000000e+00> : vector<30x128xf32>
    %2 = tpu.matmul %1, %0, %cst {dimension_numbers = #tpu.dot_dimension_numbers<[1], [0], [0], [1], [0, 0, 1, 1], [], []>} : vector<30x9xf32>, vector<9x128xf32>, vector<30x128xf32> -> vector<30x128xf32>
    %c0_3 = arith.constant 0 : index
    %c0_4 = arith.constant 0 : index
    %3 = vector.load %arg3[%c0_3, %c0_4] : memref<30x1xf32, #tpu.memory_space<vmem>>, vector<30x1xf32>
    %4 = vector.broadcast %3 : vector<30x1xf32> to vector<30x128xf32>
    %5 = arith.addf %2, %4 : vector<30x128xf32>
    %cst_5 = arith.constant 0.000000e+00 : f32
    %6 = vector.broadcast %cst_5 : f32 to vector<30x128xf32>
    %7 = arith.maximumf %5, %6 : vector<30x128xf32>
    %c0_6 = arith.constant 0 : index
    %c0_7 = arith.constant 0 : index
    %8 = vector.load %arg4[%c0_6, %c0_7] : memref<30x30xf32, #tpu.memory_space<vmem>>, vector<30x30xf32>
    %cst_8 = arith.constant dense<0.000000e+00> : vector<30x128xf32>
    %9 = tpu.matmul %8, %7, %cst_8 {dimension_numbers = #tpu.dot_dimension_numbers<[1], [0], [0], [1], [0, 0, 1, 1], [], []>} : vector<30x30xf32>, vector<30x128xf32>, vector<30x128xf32> -> vector<30x128xf32>
    %c0_9 = arith.constant 0 : index
    %c0_10 = arith.constant 0 : index
    %10 = vector.load %arg5[%c0_9, %c0_10] : memref<30x1xf32, #tpu.memory_space<vmem>>, vector<30x1xf32>
    %11 = vector.broadcast %10 : vector<30x1xf32> to vector<30x128xf32>
    %12 = arith.addf %9, %11 : vector<30x128xf32>
    %cst_11 = arith.constant 0.000000e+00 : f32
    %13 = vector.broadcast %cst_11 : f32 to vector<30x128xf32>
    %14 = arith.maximumf %12, %13 : vector<30x128xf32>
    %c0_12 = arith.constant 0 : index
    %c0_13 = arith.constant 0 : index
    %15 = vector.load %arg6[%c0_12, %c0_13] : memref<30x30xf32, #tpu.memory_space<vmem>>, vector<30x30xf32>
    %cst_14 = arith.constant dense<0.000000e+00> : vector<30x128xf32>
    %16 = tpu.matmul %15, %14, %cst_14 {dimension_numbers = #tpu.dot_dimension_numbers<[1], [0], [0], [1], [0, 0, 1, 1], [], []>} : vector<30x30xf32>, vector<30x128xf32>, vector<30x128xf32> -> vector<30x128xf32>
    %c0_15 = arith.constant 0 : index
    %c0_16 = arith.constant 0 : index
    %17 = vector.load %arg7[%c0_15, %c0_16] : memref<30x1xf32, #tpu.memory_space<vmem>>, vector<30x1xf32>
    %18 = vector.broadcast %17 : vector<30x1xf32> to vector<30x128xf32>
    %19 = arith.addf %16, %18 : vector<30x128xf32>
    %cst_17 = arith.constant 0.000000e+00 : f32
    %20 = vector.broadcast %cst_17 : f32 to vector<30x128xf32>
    %21 = arith.maximumf %19, %20 : vector<30x128xf32>
    %c0_18 = arith.constant 0 : index
    %c0_19 = arith.constant 0 : index
    %22 = vector.load %arg8[%c0_18, %c0_19] : memref<2x30xf32, #tpu.memory_space<vmem>>, vector<2x30xf32>
    %cst_20 = arith.constant dense<0.000000e+00> : vector<2x128xf32>
    %23 = tpu.matmul %22, %21, %cst_20 {dimension_numbers = #tpu.dot_dimension_numbers<[1], [0], [0], [1], [0, 0, 1, 1], [], []>} : vector<2x30xf32>, vector<30x128xf32>, vector<2x128xf32> -> vector<2x128xf32>
    %c0_21 = arith.constant 0 : index
    %c0_22 = arith.constant 0 : index
    %24 = vector.load %arg9[%c0_21, %c0_22] : memref<2x1xf32, #tpu.memory_space<vmem>>, vector<2x1xf32>
    %25 = vector.broadcast %24 : vector<2x1xf32> to vector<2x128xf32>
    %26 = arith.addf %23, %25 : vector<2x128xf32>
    %27 = vector.extract_strided_slice %26 {offsets = [0, 0], sizes = [1, 128], strides = [1, 1]} : vector<2x128xf32> to vector<1x128xf32>
    %28 = vector.extract_strided_slice %26 {offsets = [1, 0], sizes = [1, 128], strides = [1, 1]} : vector<2x128xf32> to vector<1x128xf32>
    %29 = arith.subf %27, %28 : vector<1x128xf32>
    %30 = arith.negf %29 : vector<1x128xf32>
    %31 = math.exp %30 : vector<1x128xf32>
    %cst_23 = arith.constant 1.000000e+00 : f32
    %32 = vector.broadcast %cst_23 : f32 to vector<1x128xf32>
    %33 = arith.addf %32, %31 : vector<1x128xf32>
    %34 = arith.divf %32, %33 : vector<1x128xf32>
    %cst_24 = arith.constant 1.000000e+00 : f32
    %35 = vector.broadcast %cst_24 : f32 to vector<1x128xf32>
    %36 = arith.subf %35, %34 : vector<1x128xf32>
    %37 = tpu.concatenate %34, %36 in 0 : vector<1x128xf32>, vector<1x128xf32> -> vector<2x128xf32>
    %c0_25 = arith.constant 0 : index
    %c0_26 = arith.constant 0 : index
    %38 = vector.load %arg10[%c0_25, %c0_26] : memref<2x128xf32, #tpu.memory_space<vmem>>, vector<2x128xf32>
    tpu.vector_store %arg10[%c0_25, %c0_26], %37 {strides = array<i32>} : memref<2x128xf32, #tpu.memory_space<vmem>>, vector<2x128xf32>,
    return
  }
  func.func @transform_0(%arg0: i32) -> (i32, i32) {
    %c0_i32 = arith.constant 0 : i32
    %c0_i32_0 = arith.constant 0 : i32
    return %c0_i32, %arg0 : i32, i32
  }
  func.func @transform_1(%arg0: i32) -> (i32, i32) {
    %c0_i32 = arith.constant 0 : i32
    %c0_i32_0 = arith.constant 0 : i32
    %c0_i32_1 = arith.constant 0 : i32
    return %c0_i32, %c0_i32_0 : i32, i32
  }
  func.func @transform_2(%arg0: i32) -> (i32, i32) {
    %c0_i32 = arith.constant 0 : i32
    %c0_i32_0 = arith.constant 0 : i32
    %c0_i32_1 = arith.constant 0 : i32
    return %c0_i32, %c0_i32_0 : i32, i32
  }
  func.func @transform_3(%arg0: i32) -> (i32, i32) {
    %c0_i32 = arith.constant 0 : i32
    %c0_i32_0 = arith.constant 0 : i32
    %c0_i32_1 = arith.constant 0 : i32
    return %c0_i32, %c0_i32_0 : i32, i32
  }
  func.func @transform_4(%arg0: i32) -> (i32, i32) {
    %c0_i32 = arith.constant 0 : i32
    %c0_i32_0 = arith.constant 0 : i32
    %c0_i32_1 = arith.constant 0 : i32
    return %c0_i32, %c0_i32_0 : i32, i32
  }
  func.func @transform_5(%arg0: i32) -> (i32, i32) {
    %c0_i32 = arith.constant 0 : i32
    %c0_i32_0 = arith.constant 0 : i32
    %c0_i32_1 = arith.constant 0 : i32
    return %c0_i32, %c0_i32_0 : i32, i32
  }
  func.func @transform_6(%arg0: i32) -> (i32, i32) {
    %c0_i32 = arith.constant 0 : i32
    %c0_i32_0 = arith.constant 0 : i32
    %c0_i32_1 = arith.constant 0 : i32
    return %c0_i32, %c0_i32_0 : i32, i32
  }
  func.func @transform_7(%arg0: i32) -> (i32, i32) {
    %c0_i32 = arith.constant 0 : i32
    %c0_i32_0 = arith.constant 0 : i32
    %c0_i32_1 = arith.constant 0 : i32
    return %c0_i32, %c0_i32_0 : i32, i32
  }
  func.func @transform_8(%arg0: i32) -> (i32, i32) {
    %c0_i32 = arith.constant 0 : i32
    %c0_i32_0 = arith.constant 0 : i32
    %c0_i32_1 = arith.constant 0 : i32
    return %c0_i32, %c0_i32_0 : i32, i32
  }
  func.func @transform_9(%arg0: i32) -> (i32, i32) {
    %c0_i32 = arith.constant 0 : i32
    %c0_i32_0 = arith.constant 0 : i32
    return %c0_i32, %arg0 : i32, i32
  }
}

</mosaic_0001>

<llo_original>
// kernel: tpu_custom_call.1
$region0: #{tpu_custom_call.1}
  #allocation0 [shape = 'u32[]', space=smem, size = 0x4, offset = 0x4, fixed_abs, tag = 'smem constant byte address 0x4 - core index']
  #allocation1 [shape = 'u32[144,128]{1,0:T(1,128)}', space=vmem, size = 0x12000, scoped, tag = 'internal scratch']
  %s0 = inlined_call_operand.vmem [shape: f32[9,128], index: 0, kind: input, shape index: {}]
  %s1 = inlined_call_operand.vmem [shape: f32[30,9], index: 1, kind: input, shape index: {}]
  %s2 = inlined_call_operand.vmem [shape: f32[30,1], index: 2, kind: input, shape index: {}]
  %s3 = inlined_call_operand.vmem [shape: f32[30,30], index: 3, kind: input, shape index: {}]
  %s4 = inlined_call_operand.vmem [shape: f32[30,1], index: 4, kind: input, shape index: {}]
  %s5 = inlined_call_operand.vmem [shape: f32[30,30], index: 5, kind: input, shape index: {}]
  %s6 = inlined_call_operand.vmem [shape: f32[30,1], index: 6, kind: input, shape index: {}]
  %s7 = inlined_call_operand.vmem [shape: f32[2,30], index: 7, kind: input, shape index: {}]
  %s8 = inlined_call_operand.vmem [shape: f32[2,1], index: 8, kind: input, shape index: {}]
  %s9 = inlined_call_operand.hbm [shape: f32[2,128], index: 9, kind: output, shape index: {}]
  %s10 = sld [smem:[#allocation0]]
  $region46: #{tpu_custom_call.1} parent=0
    _
  %s12 = ssub.s32 1, %s10
  %s13 = scalar_select 0, %s12, %s10
  $region1: #{tpu_custom_call.1} parent=0
    #allocation2 [shape = 'u8[1024]{0}', space=vmem, size = 0x400, scoped, tag = 'output window, operand 0, single buffered']
    #allocation3 [shape = 's32[1]{0}', space=sflag, size = 0x4, scoped, tag = 'scoped memory for tpu_custom_call.1']
    %14 = vsyncpa [#allocation3], 0
    // Predicated region
    $region2: #{tpu_custom_call.1} parent=1 // pred_check
      _
    $region3: #{tpu_custom_call.1} parent=1 // pred_check_branch
      %16 = sbr.rel (0) target = $region5
    $region4: #{tpu_custom_call.1} parent=1 // pred_region
      _
    $region5: #{tpu_custom_call.1} parent=1 // pred_fallthru
      _
    // Predicated region
    $region6: #{tpu_custom_call.1} parent=1 // pred_check
      _
    $region7: #{tpu_custom_call.1} parent=1 // pred_check_branch
      %18 = sbr.rel (0) target = $region9
    $region8: #{tpu_custom_call.1} parent=1 // pred_region
      _
    $region9: #{tpu_custom_call.1} parent=1 // pred_fallthru
      _
    // Predicated region
    $region10: #{tpu_custom_call.1} parent=1 // pred_check
      _
    $region11: #{tpu_custom_call.1} parent=1 // pred_check_branch
      %20 = sbr.rel (0) target = $region13
    $region12: #{tpu_custom_call.1} parent=1 // pred_region
      _
    $region13: #{tpu_custom_call.1} parent=1 // pred_fallthru
      _
    // Predicated region
    $region14: #{tpu_custom_call.1} parent=1 // pred_check
      _
    $region15: #{tpu_custom_call.1} parent=1 // pred_check_branch
      %22 = sbr.rel (0) target = $region17
    $region16: #{tpu_custom_call.1} parent=1 // pred_region
      _
    $region17: #{tpu_custom_call.1} parent=1 // pred_fallthru
      _
    // Predicated region
    $region18: #{tpu_custom_call.1} parent=1 // pred_check
      _
    $region19: #{tpu_custom_call.1} parent=1 // pred_check_branch
      %24 = sbr.rel (0) target = $region21
    $region20: #{tpu_custom_call.1} parent=1 // pred_region
      _
    $region21: #{tpu_custom_call.1} parent=1 // pred_fallthru
      _
    // Predicated region
    $region22: #{tpu_custom_call.1} parent=1 // pred_check
      _
    $region23: #{tpu_custom_call.1} parent=1 // pred_check_branch
      %26 = sbr.rel (0) target = $region25
    $region24: #{tpu_custom_call.1} parent=1 // pred_region
      _
    $region25: #{tpu_custom_call.1} parent=1 // pred_fallthru
      _
    // Predicated region
    $region26: #{tpu_custom_call.1} parent=1 // pred_check
      _
    $region27: #{tpu_custom_call.1} parent=1 // pred_check_branch
      %28 = sbr.rel (0) target = $region29
    $region28: #{tpu_custom_call.1} parent=1 // pred_region
      _
    $region29: #{tpu_custom_call.1} parent=1 // pred_fallthru
      _
    // Predicated region
    $region30: #{tpu_custom_call.1} parent=1 // pred_check
      _
    $region31: #{tpu_custom_call.1} parent=1 // pred_check_branch
      %30 = sbr.rel (0) target = $region33
    $region32: #{tpu_custom_call.1} parent=1 // pred_region
      _
    $region33: #{tpu_custom_call.1} parent=1 // pred_fallthru
      _
    // Predicated region
    $region34: #{tpu_custom_call.1} parent=1 // pred_check
      _
    $region35: #{tpu_custom_call.1} parent=1 // pred_check_branch
      %32 = sbr.rel (0) target = $region37
    $region36: #{tpu_custom_call.1} parent=1 // pred_region
      _
    $region37: #{tpu_custom_call.1} parent=1 // pred_fallthru
      _
    %v33 = vld [vmem:[%s0] sm:$0xff]
    %v34 = vld [vmem:[%s0 + $0x8] sm:$0x1]
    %v35 = vld [vmem:[%s1] sm:$0xff]
    %v36 = vld [vmem:[%s1 + $0x8] sm:$0xff]
    %v37 = vld [vmem:[%s1 + $0x10] sm:$0xff]
    %v38 = vld [vmem:[%s1 + $0x18] sm:$0x3f]
    %v39 = vld [vmem:[%s2] sm:$0xff]
    %v40 = vld [vmem:[%s2 + $0x8] sm:$0xff]
    %v41 = vld [vmem:[%s2 + $0x10] sm:$0xff]
    %v42 = vld [vmem:[%s2 + $0x18] sm:$0x3f]
    %44 = vset.pattern.permute.xlu0 0
    %45 = vperm.xlu0 %44, %v39
    %v46 = vpop.permute.xlu0 %45
    %49 = vset.pattern.permute.xlu0 0
    %50 = vperm.xlu0 %49, %v40
    %v51 = vpop.permute.xlu0 %50
    %54 = vset.pattern.permute.xlu0 0
    %55 = vperm.xlu0 %54, %v41
    %v56 = vpop.permute.xlu0 %55
    %59 = vset.pattern.permute.xlu0 0
    %60 = vperm.xlu0 %59, %v42
    %v61 = vpop.permute.xlu0 %60
    %vm63 = vcmask 72704
    %v65 = vsel %vm63, %v35, 0
    %v68 = vsel %vm63, %v36, 0
    %v71 = vsel %vm63, %v37, 0
    %v74 = vsel %vm63, %v38, 0
    %vm76 = vcmask 1040384
    %v78 = vsel %vm76, %v34, 0
    %80 = vmatprep.subr.mxu0 0.0
    %81 = vmatpush1.msra.mxu0 %v33
    %82 = vmatprep.subr.mxu0 0.0
    %83 = vmatpush1.msra.mxu0 %v78
    %84 = vmatprep.subr.mxu0 0.0
    %85 = vmatpush1.msra.mxu0 0.0
    %86 = vmatprep.subr.mxu0 0.0
    %87 = vmatpush1.msra.mxu0 0.0
    %88 = vmatprep.subr.mxu0 0.0
    %89 = vmatpush1.msra.mxu0 0.0
    %90 = vmatprep.subr.mxu0 0.0
    %91 = vmatpush1.msra.mxu0 0.0
    %92 = vmatprep.subr.mxu0 0.0
    %93 = vmatpush1.msra.mxu0 0.0
    %94 = vmatprep.subr.mxu0 0.0
    %95 = vmatpush1.msra.mxu0 0.0
    %96 = vmatprep.subr.mxu0 0.0
    %97 = vmatpush1.msra.mxu0 0.0
    %98 = vmatprep.subr.mxu0 0.0
    %99 = vmatpush1.msra.mxu0 0.0
    %100 = vmatprep.subr.mxu0 0.0
    %101 = vmatpush1.msra.mxu0 0.0
    %102 = vmatprep.subr.mxu0 0.0
    %103 = vmatpush1.msra.mxu0 0.0
    %104 = vmatprep.subr.mxu0 0.0
    %105 = vmatpush1.msra.mxu0 0.0
    %106 = vmatprep.subr.mxu0 0.0
    %107 = vmatpush1.msra.mxu0 0.0
    %108 = vmatprep.subr.mxu0 0.0
    %109 = vmatpush1.msra.mxu0 0.0
    %110 = vmatprep.subr.mxu0 0.0
    %111 = vmatpush1.msra.mxu0 0.0
    %112 = vmatprep.subr.mxu0 0.0
    %113 = vmatpush1.msra.mxu0 0.0
    %114 = vmatprep.subr.mxu0 0.0
    %115 = vmatpush1.msra.mxu0 0.0
    %116 = vmatprep.subr.mxu0 0.0
    %117 = vmatpush1.msra.mxu0 0.0
    %118 = vmatprep.subr.mxu0 0.0
    %119 = vmatpush1.msra.mxu0 0.0
    %120 = vmatprep.subr.mxu0 0.0
    %121 = vmatpush1.msra.mxu0 0.0
    %122 = vmatprep.subr.mxu0 0.0
    %123 = vmatpush1.msra.mxu0 0.0
    %124 = vmatprep.subr.mxu0 0.0
    %125 = vmatpush1.msra.mxu0 0.0
    %126 = vmatprep.subr.mxu0 0.0
    %127 = vmatpush1.msra.mxu0 0.0
    %128 = vmatprep.subr.mxu0 0.0
    %129 = vmatpush1.msra.mxu0 0.0
    %130 = vmatprep.subr.mxu0 0.0
    %131 = vmatpush1.msra.mxu0 0.0
    %132 = vmatprep.subr.mxu0 0.0
    %133 = vmatpush1.msra.mxu0 0.0
    %134 = vmatprep.subr.mxu0 0.0
    %135 = vmatpush1.msra.mxu0 0.0
    %136 = vmatprep.subr.mxu0 0.0
    %137 = vmatpush1.msra.mxu0 0.0
    %138 = vmatprep.subr.mxu0 0.0
    %139 = vmatpush1.msra.mxu0 0.0
    %140 = vmatprep.subr.mxu0 0.0
    %141 = vmatpush1.msra.mxu0 0.0
    %142 = vmatprep.subr.mxu0 0.0
    %143 = vmatpush1.msra.mxu0 0.0
    %144 = vmatprep.mubr.f32.mxu0 0.0
    %145 = vmatmul.mubr.f32.gmra.mrb[0].mxu0 %v65
    %v146 = vpop.f32.mrb[0].mxu0
    %v147 = vadd.f32 %v46, %v146
    %v148 = vpop.f32.mrb[0].mxu0
    %149 = vmatprep.mubr.f32.mxu0 0.0
    %150 = vmatmul.mubr.f32.gmra.mrb[0].mxu0 %v68
    %v151 = vpop.f32.mrb[0].mxu0
    %v152 = vadd.f32 %v51, %v151
    %v153 = vpop.f32.mrb[0].mxu0
    %154 = vmatprep.mubr.f32.mxu0 0.0
    %155 = vmatmul.mubr.f32.gmra.mrb[0].mxu0 %v71
    %v156 = vpop.f32.mrb[0].mxu0
    %v157 = vadd.f32 %v56, %v156
    %v158 = vpop.f32.mrb[0].mxu0
    %159 = vmatprep.mubr.f32.mxu0 0.0
    %160 = vmatmul.mubr.f32.gmra.mrb[0].mxu0 %v74
    %v161 = vpop.f32.mrb[0].mxu0
    %v162 = vadd.f32 %v61, %v161
    %v163 = vpop.f32.mrb[0].mxu0
    %164 = vdwg.mxu0
    %v165 = vmax.f32 %v147, 0.0
    %v166 = vmax.f32 %v152, 0.0
    %v167 = vmax.f32 %v157, 0.0
    %v168 = vmax.f32 %v162, 0.0
    %v169 = vld [vmem:[%s3] sm:$0xff]
    %v170 = vld [vmem:[%s3 + $0x8] sm:$0xff]
    %v171 = vld [vmem:[%s3 + $0x10] sm:$0xff]
    %v172 = vld [vmem:[%s3 + $0x18] sm:$0x3f]
    %v173 = vld [vmem:[%s4] sm:$0xff]
    %v174 = vld [vmem:[%s4 + $0x8] sm:$0xff]
    %v175 = vld [vmem:[%s4 + $0x10] sm:$0xff]
    %v176 = vld [vmem:[%s4 + $0x18] sm:$0x3f]
    %178 = vset.pattern.permute.xlu0 0
    %179 = vperm.xlu0 %178, %v173
    %v180 = vpop.permute.xlu0 %179
    %183 = vset.pattern.permute.xlu0 0
    %184 = vperm.xlu0 %183, %v174
    %v185 = vpop.permute.xlu0 %184
    %188 = vset.pattern.permute.xlu0 0
    %189 = vperm.xlu0 %188, %v175
    %v190 = vpop.permute.xlu0 %189
    %193 = vset.pattern.permute.xlu0 0
    %194 = vperm.xlu0 %193, %v176
    %v195 = vpop.permute.xlu0 %194
    %vm197 = vcmask 244736
    %v199 = vsel %vm197, %v169, 0
    %v202 = vsel %vm197, %v170, 0
    %v205 = vsel %vm197, %v171, 0
    %v208 = vsel %vm197, %v172, 0
    %vm210 = vcmask 1045504
    %v212 = vsel %vm210, %v168, 0
    %214 = vmatprep.subr.mxu0 0.0
    %215 = vmatpush1.msra.mxu0 %v165
    %216 = vmatprep.subr.mxu0 0.0
    %217 = vmatpush1.msra.mxu0 %v166
    %218 = vmatprep.subr.mxu0 0.0
    %219 = vmatpush1.msra.mxu0 %v167
    %220 = vmatprep.subr.mxu0 0.0
    %221 = vmatpush1.msra.mxu0 %v212
    %222 = vmatprep.subr.mxu0 0.0
    %223 = vmatpush1.msra.mxu0 0.0
    %224 = vmatprep.subr.mxu0 0.0
    %225 = vmatpush1.msra.mxu0 0.0
    %226 = vmatprep.subr.mxu0 0.0
    %227 = vmatpush1.msra.mxu0 0.0
    %228 = vmatprep.subr.mxu0 0.0
    %229 = vmatpush1.msra.mxu0 0.0
    %230 = vmatprep.subr.mxu0 0.0
    %231 = vmatpush1.msra.mxu0 0.0
    %232 = vmatprep.subr.mxu0 0.0
    %233 = vmatpush1.msra.mxu0 0.0
    %234 = vmatprep.subr.mxu0 0.0
    %235 = vmatpush1.msra.mxu0 0.0
    %236 = vmatprep.subr.mxu0 0.0
    %237 = vmatpush1.msra.mxu0 0.0
    %238 = vmatprep.subr.mxu0 0.0
    %239 = vmatpush1.msra.mxu0 0.0
    %240 = vmatprep.subr.mxu0 0.0
    %241 = vmatpush1.msra.mxu0 0.0
    %242 = vmatprep.subr.mxu0 0.0
    %243 = vmatpush1.msra.mxu0 0.0
    %244 = vmatprep.subr.mxu0 0.0
    %245 = vmatpush1.msra.mxu0 0.0
    %246 = vmatprep.subr.mxu0 0.0
    %247 = vmatpush1.msra.mxu0 0.0
    %248 = vmatprep.subr.mxu0 0.0
    %249 = vmatpush1.msra.mxu0 0.0
    %250 = vmatprep.subr.mxu0 0.0
    %251 = vmatpush1.msra.mxu0 0.0
    %252 = vmatprep.subr.mxu0 0.0
    %253 = vmatpush1.msra.mxu0 0.0
    %254 = vmatprep.subr.mxu0 0.0
    %255 = vmatpush1.msra.mxu0 0.0
    %256 = vmatprep.subr.mxu0 0.0
    %257 = vmatpush1.msra.mxu0 0.0
    %258 = vmatprep.subr.mxu0 0.0
    %259 = vmatpush1.msra.mxu0 0.0
    %260 = vmatprep.subr.mxu0 0.0
    %261 = vmatpush1.msra.mxu0 0.0
    %262 = vmatprep.subr.mxu0 0.0
    %263 = vmatpush1.msra.mxu0 0.0
    %264 = vmatprep.subr.mxu0 0.0
    %265 = vmatpush1.msra.mxu0 0.0
    %266 = vmatprep.subr.mxu0 0.0
    %267 = vmatpush1.msra.mxu0 0.0
    %268 = vmatprep.subr.mxu0 0.0
    %269 = vmatpush1.msra.mxu0 0.0
    %270 = vmatprep.subr.mxu0 0.0
    %271 = vmatpush1.msra.mxu0 0.0
    %272 = vmatprep.subr.mxu0 0.0
    %273 = vmatpush1.msra.mxu0 0.0
    %274 = vmatprep.subr.mxu0 0.0
    %275 = vmatpush1.msra.mxu0 0.0
    %276 = vmatprep.subr.mxu0 0.0
    %277 = vmatpush1.msra.mxu0 0.0
    %278 = vmatprep.mubr.f32.mxu0 0.0
    %279 = vmatmul.mubr.f32.gmra.mrb[0].mxu0 %v199
    %v280 = vpop.f32.mrb[0].mxu0
    %v281 = vadd.f32 %v180, %v280
    %v282 = vpop.f32.mrb[0].mxu0
    %283 = vmatprep.mubr.f32.mxu0 0.0
    %284 = vmatmul.mubr.f32.gmra.mrb[0].mxu0 %v202
    %v285 = vpop.f32.mrb[0].mxu0
    %v286 = vadd.f32 %v185, %v285
    %v287 = vpop.f32.mrb[0].mxu0
    %288 = vmatprep.mubr.f32.mxu0 0.0
    %289 = vmatmul.mubr.f32.gmra.mrb[0].mxu0 %v205
    %v290 = vpop.f32.mrb[0].mxu0
    %v291 = vadd.f32 %v190, %v290
    %v292 = vpop.f32.mrb[0].mxu0
    %293 = vmatprep.mubr.f32.mxu0 0.0
    %294 = vmatmul.mubr.f32.gmra.mrb[0].mxu0 %v208
    %v295 = vpop.f32.mrb[0].mxu0
    %v296 = vadd.f32 %v195, %v295
    %v297 = vpop.f32.mrb[0].mxu0
    %298 = vdwg.mxu0
    %v299 = vmax.f32 %v281, 0.0
    %v300 = vmax.f32 %v286, 0.0
    %v301 = vmax.f32 %v291, 0.0
    %v302 = vmax.f32 %v296, 0.0
    %v303 = vld [vmem:[%s5] sm:$0xff]
    %v304 = vld [vmem:[%s5 + $0x8] sm:$0xff]
    %v305 = vld [vmem:[%s5 + $0x10] sm:$0xff]
    %v306 = vld [vmem:[%s5 + $0x18] sm:$0x3f]
    %v307 = vld [vmem:[%s6] sm:$0xff]
    %v308 = vld [vmem:[%s6 + $0x8] sm:$0xff]
    %v309 = vld [vmem:[%s6 + $0x10] sm:$0xff]
    %v310 = vld [vmem:[%s6 + $0x18] sm:$0x3f]
    %312 = vset.pattern.permute.xlu0 0
    %313 = vperm.xlu0 %312, %v307
    %v314 = vpop.permute.xlu0 %313
    %317 = vset.pattern.permute.xlu0 0
    %318 = vperm.xlu0 %317, %v308
    %v319 = vpop.permute.xlu0 %318
    %322 = vset.pattern.permute.xlu0 0
    %323 = vperm.xlu0 %322, %v309
    %v324 = vpop.permute.xlu0 %323
    %327 = vset.pattern.permute.xlu0 0
    %328 = vperm.xlu0 %327, %v310
    %v329 = vpop.permute.xlu0 %328
    %v332 = vsel %vm197, %v303, 0
    %v335 = vsel %vm197, %v304, 0
    %v338 = vsel %vm197, %v305, 0
    %v341 = vsel %vm197, %v306, 0
    %v344 = vsel %vm210, %v302, 0
    %346 = vmatprep.subr.mxu0 0.0
    %347 = vmatpush1.msra.mxu0 %v299
    %348 = vmatprep.subr.mxu0 0.0
    %349 = vmatpush1.msra.mxu0 %v300
    %350 = vmatprep.subr.mxu0 0.0
    %351 = vmatpush1.msra.mxu0 %v301
    %352 = vmatprep.subr.mxu0 0.0
    %353 = vmatpush1.msra.mxu0 %v344
    %354 = vmatprep.subr.mxu0 0.0
    %355 = vmatpush1.msra.mxu0 0.0
    %356 = vmatprep.subr.mxu0 0.0
    %357 = vmatpush1.msra.mxu0 0.0
    %358 = vmatprep.subr.mxu0 0.0
    %359 = vmatpush1.msra.mxu0 0.0
    %360 = vmatprep.subr.mxu0 0.0
    %361 = vmatpush1.msra.mxu0 0.0
    %362 = vmatprep.subr.mxu0 0.0
    %363 = vmatpush1.msra.mxu0 0.0
    %364 = vmatprep.subr.mxu0 0.0
    %365 = vmatpush1.msra.mxu0 0.0
    %366 = vmatprep.subr.mxu0 0.0
    %367 = vmatpush1.msra.mxu0 0.0
    %368 = vmatprep.subr.mxu0 0.0
    %369 = vmatpush1.msra.mxu0 0.0
    %370 = vmatprep.subr.mxu0 0.0
    %371 = vmatpush1.msra.mxu0 0.0
    %372 = vmatprep.subr.mxu0 0.0
    %373 = vmatpush1.msra.mxu0 0.0
    %374 = vmatprep.subr.mxu0 0.0
    %375 = vmatpush1.msra.mxu0 0.0
    %376 = vmatprep.subr.mxu0 0.0
    %377 = vmatpush1.msra.mxu0 0.0
    %378 = vmatprep.subr.mxu0 0.0
    %379 = vmatpush1.msra.mxu0 0.0
    %380 = vmatprep.subr.mxu0 0.0
    %381 = vmatpush1.msra.mxu0 0.0
    %382 = vmatprep.subr.mxu0 0.0
    %383 = vmatpush1.msra.mxu0 0.0
    %384 = vmatprep.subr.mxu0 0.0
    %385 = vmatpush1.msra.mxu0 0.0
    %386 = vmatprep.subr.mxu0 0.0
    %387 = vmatpush1.msra.mxu0 0.0
    %388 = vmatprep.subr.mxu0 0.0
    %389 = vmatpush1.msra.mxu0 0.0
    %390 = vmatprep.subr.mxu0 0.0
    %391 = vmatpush1.msra.mxu0 0.0
    %392 = vmatprep.subr.mxu0 0.0
    %393 = vmatpush1.msra.mxu0 0.0
    %394 = vmatprep.subr.mxu0 0.0
    %395 = vmatpush1.msra.mxu0 0.0
    %396 = vmatprep.subr.mxu0 0.0
    %397 = vmatpush1.msra.mxu0 0.0
    %398 = vmatprep.subr.mxu0 0.0
    %399 = vmatpush1.msra.mxu0 0.0
    %400 = vmatprep.subr.mxu0 0.0
    %401 = vmatpush1.msra.mxu0 0.0
    %402 = vmatprep.subr.mxu0 0.0
    %403 = vmatpush1.msra.mxu0 0.0
    %404 = vmatprep.subr.mxu0 0.0
    %405 = vmatpush1.msra.mxu0 0.0
    %406 = vmatprep.subr.mxu0 0.0
    %407 = vmatpush1.msra.mxu0 0.0
    %408 = vmatprep.subr.mxu0 0.0
    %409 = vmatpush1.msra.mxu0 0.0
    %410 = vmatprep.mubr.f32.mxu0 0.0
    %411 = vmatmul.mubr.f32.gmra.mrb[0].mxu0 %v332
    %v412 = vpop.f32.mrb[0].mxu0
    %v413 = vadd.f32 %v314, %v412
    %v414 = vpop.f32.mrb[0].mxu0
    %415 = vmatprep.mubr.f32.mxu0 0.0
    %416 = vmatmul.mubr.f32.gmra.mrb[0].mxu0 %v335
    %v417 = vpop.f32.mrb[0].mxu0
    %v418 = vadd.f32 %v319, %v417
    %v419 = vpop.f32.mrb[0].mxu0
    %420 = vmatprep.mubr.f32.mxu0 0.0
    %421 = vmatmul.mubr.f32.gmra.mrb[0].mxu0 %v338
    %v422 = vpop.f32.mrb[0].mxu0
    %v423 = vadd.f32 %v324, %v422
    %v424 = vpop.f32.mrb[0].mxu0
    %425 = vmatprep.mubr.f32.mxu0 0.0
    %426 = vmatmul.mubr.f32.gmra.mrb[0].mxu0 %v341
    %v427 = vpop.f32.mrb[0].mxu0
    %v428 = vadd.f32 %v329, %v427
    %v429 = vpop.f32.mrb[0].mxu0
    %430 = vdwg.mxu0
    %v431 = vmax.f32 %v413, 0.0
    %v432 = vmax.f32 %v418, 0.0
    %v433 = vmax.f32 %v423, 0.0
    %v434 = vmax.f32 %v428, 0.0
    %v435 = vld [vmem:[%s7] sm:$0x3]
    %v436 = vld [vmem:[%s8] sm:$0x3]
    %438 = vset.pattern.permute.xlu0 0
    %439 = vperm.xlu0 %438, %v436
    %v440 = vpop.permute.xlu0 %439
    %v443 = vsel %vm197, %v435, 0
    %v446 = vsel %vm210, %v434, 0
    %448 = vmatprep.subr.mxu0 0.0
    %449 = vmatpush1.msra.mxu0 %v431
    %450 = vmatprep.subr.mxu0 0.0
    %451 = vmatpush1.msra.mxu0 %v432
    %452 = vmatprep.subr.mxu0 0.0
    %453 = vmatpush1.msra.mxu0 %v433
    %454 = vmatprep.subr.mxu0 0.0
    %455 = vmatpush1.msra.mxu0 %v446
    %456 = vmatprep.subr.mxu0 0.0
    %457 = vmatpush1.msra.mxu0 0.0
    %458 = vmatprep.subr.mxu0 0.0
    %459 = vmatpush1.msra.mxu0 0.0
    %460 = vmatprep.subr.mxu0 0.0
    %461 = vmatpush1.msra.mxu0 0.0
    %462 = vmatprep.subr.mxu0 0.0
    %463 = vmatpush1.msra.mxu0 0.0
    %464 = vmatprep.subr.mxu0 0.0
    %465 = vmatpush1.msra.mxu0 0.0
    %466 = vmatprep.subr.mxu0 0.0
    %467 = vmatpush1.msra.mxu0 0.0
    %468 = vmatprep.subr.mxu0 0.0
    %469 = vmatpush1.msra.mxu0 0.0
    %470 = vmatprep.subr.mxu0 0.0
    %471 = vmatpush1.msra.mxu0 0.0
    %472 = vmatprep.subr.mxu0 0.0
    %473 = vmatpush1.msra.mxu0 0.0
    %474 = vmatprep.subr.mxu0 0.0
    %475 = vmatpush1.msra.mxu0 0.0
    %476 = vmatprep.subr.mxu0 0.0
    %477 = vmatpush1.msra.mxu0 0.0
    %478 = vmatprep.subr.mxu0 0.0
    %479 = vmatpush1.msra.mxu0 0.0
    %480 = vmatprep.subr.mxu0 0.0
    %481 = vmatpush1.msra.mxu0 0.0
    %482 = vmatprep.subr.mxu0 0.0
    %483 = vmatpush1.msra.mxu0 0.0
    %484 = vmatprep.subr.mxu0 0.0
    %485 = vmatpush1.msra.mxu0 0.0
    %486 = vmatprep.subr.mxu0 0.0
    %487 = vmatpush1.msra.mxu0 0.0
    %488 = vmatprep.subr.mxu0 0.0
    %489 = vmatpush1.msra.mxu0 0.0
    %490 = vmatprep.subr.mxu0 0.0
    %491 = vmatpush1.msra.mxu0 0.0
    %492 = vmatprep.subr.mxu0 0.0
    %493 = vmatpush1.msra.mxu0 0.0
    %494 = vmatprep.subr.mxu0 0.0
    %495 = vmatpush1.msra.mxu0 0.0
    %496 = vmatprep.subr.mxu0 0.0
    %497 = vmatpush1.msra.mxu0 0.0
    %498 = vmatprep.subr.mxu0 0.0
    %499 = vmatpush1.msra.mxu0 0.0
    %500 = vmatprep.subr.mxu0 0.0
    %501 = vmatpush1.msra.mxu0 0.0
    %502 = vmatprep.subr.mxu0 0.0
    %503 = vmatpush1.msra.mxu0 0.0
    %504 = vmatprep.subr.mxu0 0.0
    %505 = vmatpush1.msra.mxu0 0.0
    %506 = vmatprep.subr.mxu0 0.0
    %507 = vmatpush1.msra.mxu0 0.0
    %508 = vmatprep.subr.mxu0 0.0
    %509 = vmatpush1.msra.mxu0 0.0
    %510 = vmatprep.subr.mxu0 0.0
    %511 = vmatpush1.msra.mxu0 0.0
    %512 = vmatprep.mubr.f32.mxu0 0.0
    %513 = vmatmul.mubr.f32.gmra.mrb[0].mxu0 %v443
    %v514 = vpop.f32.mrb[0].mxu0
    %v515 = vadd.f32 %v440, %v514
    %v516 = vpop.f32.mrb[0].mxu0
    %517 = vdwg.mxu0
    %v519 = vrot.slane %v515, 1
    %v521 = vsub.f32 %v515, %v519
    %v522 = vxor.u32 %v521, 2147483648
    %v523 = vmul.f32 %v522, 1.442695
    %v524 = vpow.pop %v523
    %v525 = vadd.f32 %v524, 1.0
    %v526 = vrcp.pop %v525
    %v527 = vmul.f32 1.0, %v526
    %v528 = vsub.f32 1.0, %v527
    %v530 = vrot.slane %v528, 7
    %v532 = vsel %vm76, %v527, %v530
    %533 = vst [vmem:[#allocation2] sm:$0x3] %v532
    // Predicated region
    $region38: #{tpu_custom_call.1} parent=1 // pred_check
      _
    $region39: #{tpu_custom_call.1} parent=1 // pred_check_branch
      %535 = sbr.rel (0) target = $region41
    $region40: #{tpu_custom_call.1} parent=1 // pred_region
      %s537 = ssub.s32 32, 32
      %538 = vsyncadd [#allocation3], %s537
      %s540 = sshll.u32 [#allocation2], 4
      %s541 = int_to_ptr.vmem [resolvable:$true] %s540
      %543 = dma.vmem_to_hbm [thread:$0]  %s541, 32, %s9, [#allocation3]
    $region41: #{tpu_custom_call.1} parent=1 // pred_fallthru
      _
    // Predicated region
    $region42: #{tpu_custom_call.1} parent=1 // pred_check
      _
    $region43: #{tpu_custom_call.1} parent=1 // pred_check_branch
      %545 = sbr.rel (0) target = $region45
    $region44: #{tpu_custom_call.1} parent=1 // pred_region
      %546 = dma.done [#allocation3], 32
    $region45: #{tpu_custom_call.1} parent=1 // pred_fallthru
      _
    %547 = vsyncpa [#allocation3], 1

</llo_original>
